<compile_context>
chip_gen: v7x
topology: tpu7x:2x2x1
jax: 0.10.0
libtpu: 0.0.40
codegen_flags: <defaults>
</compile_context>

<pallas_src>
import jax
import jax.numpy as jnp
from jax.experimental import pallas as pl
from jax.experimental.pallas import tpu as pltpu


# ----------------------------------------------------------------------------
# Bilinear interpolation matrices (built in plain JAX, outside the kernel).
# Convention (kornia RandomAffine / warp_affine, zeros padding):
#   src = (dst - c) / s + c   with  c = (size - 1) / 2
# Samples falling outside [0, size-1] contribute zero (zeros padding).
# ----------------------------------------------------------------------------
def _bilinear_matrix(size: int, scale, transposed: bool = False):
    c = (size - 1) * 0.5
    dst = jnp.arange(size, dtype=jnp.float32)
    src = (dst - c) / scale + c
    i0f = jnp.floor(src)
    frac = src - i0f
    i0 = i0f.astype(jnp.int32)
    i1 = i0 + 1
    w0 = jnp.where((i0 >= 0) & (i0 <= size - 1), 1.0 - frac, 0.0)
    w1 = jnp.where((i1 >= 0) & (i1 <= size - 1), frac, 0.0)
    i0c = jnp.clip(i0, 0, size - 1)
    i1c = jnp.clip(i1, 0, size - 1)
    src_idx = jnp.arange(size, dtype=jnp.int32)
    if transposed:
        # (src, dst): M_T[s, d] = weight of source pixel s for destination d.
        # Built already transposed so the kernel never transposes anything.
        m = (jnp.where(src_idx[:, None] == i0c[None, :], w0[None, :], 0.0)
             + jnp.where(src_idx[:, None] == i1c[None, :], w1[None, :], 0.0))
    else:
        # (dst, src)
        m = (jnp.where(src_idx[None, :] == i0c[:, None], w0[:, None], 0.0)
             + jnp.where(src_idx[None, :] == i1c[:, None], w1[:, None], 0.0))
    return m.astype(jnp.float32)


# ----------------------------------------------------------------------------
# Pallas kernel: fused  per-channel (Wy @ x[c])  ->  (C*H, W) @ Wx^T
#                -> *255 + 0.5 -> clamp -> uint8   in a single grid step.
# ----------------------------------------------------------------------------
def _warp_kernel(wy_ref, x_ref, wxt_ref, o_ref):
    c = x_ref.shape[0]
    wy = wy_ref[...]          # (H, H)   dst_y x src_y
    wxt = wxt_ref[...]        # (W, W)   src_x x dst_x (pre-transposed)

    # Row pass: C statically-unrolled MXU matmuls, intermediate kept as a value
    # (no VMEM scratch round trip).
    rows = [
        jnp.dot(wy, x_ref[ci], preferred_element_type=jnp.float32)   # (H, W)
        for ci in range(c)
    ]
    t = jnp.concatenate(rows, axis=0)                                # (C*H, W)

    # Column pass: one wide GEMM, M = C*H amortizes the Wx^T load.
    out = jnp.dot(t, wxt, preferred_element_type=jnp.float32)        # (C*H, W)

    # Epilogue: scale to [0, 255], round-half-up, saturate, emit uint8.
    out = jnp.clip(out * 255.0 + 0.5, 0.0, 255.0)
    o_ref[...] = out.astype(jnp.int32).astype(jnp.uint8)


def _warp_scale_pallas(wy, x, wxt):
    c, h, w = x.shape
    return pl.pallas_call(
        _warp_kernel,
        out_shape=jax.ShapeDtypeStruct((c * h, w), jnp.uint8),
        grid_spec=pltpu.PrefetchScalarGridSpec(
            num_scalar_prefetch=0,
            grid=(1,),
            in_specs=[
                pl.BlockSpec((h, h), lambda i: (0, 0)),        # Wy
                pl.BlockSpec((c, h, w), lambda i: (0, 0, 0)),  # full image
                pl.BlockSpec((w, w), lambda i: (0, 0)),        # Wx^T
            ],
            out_specs=pl.BlockSpec((c * h, w), lambda i: (0, 0)),
        ),
        compiler_params=pltpu.CompilerParams(
            # Tiny, overhead-bound problem: keep it on one TensorCore
            # (avoids the 3-over-2-core imbalance on v7x megacore).
            dimension_semantics=("arbitrary",),
        ),
    )(wy, x, wxt)


# ----------------------------------------------------------------------------
# Wrapper: sample the random scale per call, build weight matrices, run the
# kernel, transpose CHW -> HWC (like np.transpose(np_image, (1, 2, 0))).
# ----------------------------------------------------------------------------
@jax.jit
def data_augmentation(x, key):
    c, h, w = x.shape
    # Random isotropic scale, sampled per call (not baked into the kernel).
    s = jax.random.uniform(key, (), jnp.float32, minval=0.5, maxval=1.5)

    wy = _bilinear_matrix(h, s)                       # (H, H)  dst x src
    wxt = _bilinear_matrix(w, s, transposed=True)     # (W, W)  src x dst

    out_flat = _warp_scale_pallas(wy, x.astype(jnp.float32), wxt)  # (C*H, W) u8
    chw_u8 = out_flat.reshape(c, h, w)
    hwc_u8 = jnp.transpose(chw_u8, (1, 2, 0))         # CHW -> HWC (outside kernel)
    return hwc_u8


if __name__ == "__main__":
    key = jax.random.PRNGKey(0)
    k_img, k_aug = jax.random.split(key)

    C, H, W = 3, 128, 128
    x = jax.random.uniform(k_img, (C, H, W), dtype=jnp.float32)   # image in [0, 1]

    out = jax.block_until_ready(data_augmentation(x, k_aug))
    assert out.shape == (H, W, C) and out.dtype == jnp.uint8

    # Pure-JAX f32 separable reference (same sampled scale, same convention).
    s = jax.random.uniform(k_aug, (), jnp.float32, minval=0.5, maxval=1.5)
    wy_r = _bilinear_matrix(H, s)
    wx_r = _bilinear_matrix(W, s)
    t = jnp.einsum("yh,chw->cyw", wy_r, x)
    ref = jnp.einsum("cyw,xw->cyx", t, wx_r)
    ref = jnp.clip(ref * 255.0 + 0.5, 0.0, 255.0)
    ref_u8 = jnp.transpose(ref.astype(jnp.int32), (1, 2, 0))

    max_diff = int(jnp.max(jnp.abs(out.astype(jnp.int32) - ref_u8)))
    # f32 MXU multi-pass vs XLA f32 dot differ only in last-ulp accumulation
    # order; at worst one count at a .5 rounding boundary.
    assert max_diff <= 1, f"max deviation from f32 reference too large: {max_diff}"

    print("KERNEL_OK")
</pallas_src>

<mosaic_0001>
module attributes {stable_mosaic.version = 11 : i64} {
  func.func @_warp_kernel(%arg0: i32, %arg1: memref<128x128xf32, #tpu.memory_space<vmem>>, %arg2: memref<3x128x128xf32, #tpu.memory_space<vmem>>, %arg3: memref<128x128xf32, #tpu.memory_space<vmem>>, %arg4: memref<384x128xi8, #tpu.memory_space<vmem>>) attributes {dimension_semantics = [#tpu.dimension_semantics<arbitrary>], iteration_bounds = array<i64: 1>, scalar_prefetch = 0 : i64, scratch_operands = 0 : i64, tpu.core_type = #tpu.core_type<tc>, window_params = [{pipeline_mode = #tpu.pipeline_mode<synchronous>, transform_indices = @transform_0, window_bounds = array<i64: 128, 128>}, {pipeline_mode = #tpu.pipeline_mode<synchronous>, transform_indices = @transform_1, window_bounds = array<i64: 3, 128, 128>}, {pipeline_mode = #tpu.pipeline_mode<synchronous>, transform_indices = @transform_2, window_bounds = array<i64: 128, 128>}, {pipeline_mode = #tpu.pipeline_mode<synchronous>, transform_indices = @transform_3, window_bounds = array<i64: 384, 128>}]} {
    %c0 = arith.constant 0 : index
    %c0_0 = arith.constant 0 : index
    %0 = vector.load %arg1[%c0, %c0_0] : memref<128x128xf32, #tpu.memory_space<vmem>>, vector<128x128xf32>
    %c0_1 = arith.constant 0 : index
    %c0_2 = arith.constant 0 : index
    %1 = vector.load %arg3[%c0_1, %c0_2] : memref<128x128xf32, #tpu.memory_space<vmem>>, vector<128x128xf32>
    %c0_3 = arith.constant 0 : index
    %c0_4 = arith.constant 0 : index
    %c0_5 = arith.constant 0 : index
    %2 = vector.load %arg2[%c0_3, %c0_4, %c0_5] : memref<3x128x128xf32, #tpu.memory_space<vmem>>, vector<1x128x128xf32>
    %3 = vector.shape_cast %2 : vector<1x128x128xf32> to vector<128x128xf32>
    %cst = arith.constant dense<0.000000e+00> : vector<128x128xf32>
    %4 = tpu.matmul %0, %3, %cst {dimension_numbers = #tpu.dot_dimension_numbers<[1], [0], [0], [1], [0, 0, 1, 1], [], []>} : vector<128x128xf32>, vector<128x128xf32>, vector<128x128xf32> -> vector<128x128xf32>
    %c1 = arith.constant 1 : index
    %c0_6 = arith.constant 0 : index
    %c0_7 = arith.constant 0 : index
    %5 = vector.load %arg2[%c1, %c0_6, %c0_7] : memref<3x128x128xf32, #tpu.memory_space<vmem>>, vector<1x128x128xf32>
    %6 = vector.shape_cast %5 : vector<1x128x128xf32> to vector<128x128xf32>
    %cst_8 = arith.constant dense<0.000000e+00> : vector<128x128xf32>
    %7 = tpu.matmul %0, %6, %cst_8 {dimension_numbers = #tpu.dot_dimension_numbers<[1], [0], [0], [1], [0, 0, 1, 1], [], []>} : vector<128x128xf32>, vector<128x128xf32>, vector<128x128xf32> -> vector<128x128xf32>
    %c2 = arith.constant 2 : index
    %c0_9 = arith.constant 0 : index
    %c0_10 = arith.constant 0 : index
    %8 = vector.load %arg2[%c2, %c0_9, %c0_10] : memref<3x128x128xf32, #tpu.memory_space<vmem>>, vector<1x128x128xf32>
    %9 = vector.shape_cast %8 : vector<1x128x128xf32> to vector<128x128xf32>
    %cst_11 = arith.constant dense<0.000000e+00> : vector<128x128xf32>
    %10 = tpu.matmul %0, %9, %cst_11 {dimension_numbers = #tpu.dot_dimension_numbers<[1], [0], [0], [1], [0, 0, 1, 1], [], []>} : vector<128x128xf32>, vector<128x128xf32>, vector<128x128xf32> -> vector<128x128xf32>
    %11 = tpu.concatenate %4, %7, %10 in 0 : vector<128x128xf32>, vector<128x128xf32>, vector<128x128xf32> -> vector<384x128xf32>
    %cst_12 = arith.constant dense<0.000000e+00> : vector<384x128xf32>
    %12 = tpu.matmul %11, %1, %cst_12 {dimension_numbers = #tpu.dot_dimension_numbers<[1], [0], [0], [1], [0, 0, 1, 1], [], []>} : vector<384x128xf32>, vector<128x128xf32>, vector<384x128xf32> -> vector<384x128xf32>
    %cst_13 = arith.constant 2.550000e+02 : f32
    %13 = vector.broadcast %cst_13 : f32 to vector<384x128xf32>
    %14 = arith.mulf %12, %13 : vector<384x128xf32>
    %cst_14 = arith.constant 5.000000e-01 : f32
    %15 = vector.broadcast %cst_14 : f32 to vector<384x128xf32>
    %16 = arith.addf %14, %15 : vector<384x128xf32>
    %cst_15 = arith.constant 0.000000e+00 : f32
    %cst_16 = arith.constant 2.550000e+02 : f32
    %17 = vector.broadcast %cst_15 : f32 to vector<384x128xf32>
    %18 = arith.maximumf %17, %16 : vector<384x128xf32>
    %19 = vector.broadcast %cst_16 : f32 to vector<384x128xf32>
    %20 = arith.minimumf %19, %18 : vector<384x128xf32>
    %21 = arith.fptosi %20 : vector<384x128xf32> to vector<384x128xi32>
    %22 = arith.trunci %21 : vector<384x128xi32> to vector<384x128xi8>
    %c0_17 = arith.constant 0 : index
    %c0_18 = arith.constant 0 : index
    %23 = vector.load %arg4[%c0_17, %c0_18] : memref<384x128xi8, #tpu.memory_space<vmem>>, vector<384x128xi8>
    tpu.vector_store %arg4[%c0_17, %c0_18], %22 {strides = array<i32>} : memref<384x128xi8, #tpu.memory_space<vmem>>, vector<384x128xi8>,
    return
  }
  func.func @transform_0(%arg0: i32) -> (i32, i32) {
    %c0_i32 = arith.constant 0 : i32
    %c0_i32_0 = arith.constant 0 : i32
    %c0_i32_1 = arith.constant 0 : i32
    return %c0_i32, %c0_i32_0 : i32, i32
  }
  func.func @transform_1(%arg0: i32) -> (i32, i32, i32) {
    %c0_i32 = arith.constant 0 : i32
    %c0_i32_0 = arith.constant 0 : i32
    %c0_i32_1 = arith.constant 0 : i32
    %c0_i32_2 = arith.constant 0 : i32
    return %c0_i32, %c0_i32_0, %c0_i32_1 : i32, i32, i32
  }
  func.func @transform_2(%arg0: i32) -> (i32, i32) {
    %c0_i32 = arith.constant 0 : i32
    %c0_i32_0 = arith.constant 0 : i32
    %c0_i32_1 = arith.constant 0 : i32
    return %c0_i32, %c0_i32_0 : i32, i32
  }
  func.func @transform_3(%arg0: i32) -> (i32, i32) {
    %c0_i32 = arith.constant 0 : i32
    %c0_i32_0 = arith.constant 0 : i32
    %c0_i32_1 = arith.constant 0 : i32
    return %c0_i32, %c0_i32_0 : i32, i32
  }
}

</mosaic_0001>

<llo_original>
// kernel: data_augmentation.1
$region0: #{data_augmentation.1}
  #allocation0 [shape = 'u32[]', space=smem, size = 0x4, offset = 0x4, fixed_abs, tag = 'smem constant byte address 0x4 - core index']
  #allocation1 [shape = 'u32[144,128]{1,0:T(1,128)}', space=vmem, size = 0x12000, scoped, tag = 'internal scratch']
  %s0 = inlined_call_operand.vmem [shape: f32[128,128], index: 0, kind: input, shape index: {}]
  %s1 = inlined_call_operand.vmem [shape: f32[3,128,128], index: 1, kind: input, shape index: {}]
  %s2 = inlined_call_operand.vmem [shape: f32[128,128], index: 2, kind: input, shape index: {}]
  %s3 = inlined_call_operand.hbm [shape: u8[384,128], index: 3, kind: output, shape index: {}]
  %s4 = sld [smem:[#allocation0]]
  $region22: #{data_augmentation.1} parent=0
    _
  %s6 = ssub.s32 1, %s4
  %s7 = scalar_select 0, %s6, %s4
  $region1: #{data_augmentation.1} parent=0
    #allocation2 [shape = 'u8[49152]{0}', space=vmem, size = 0xc000, scoped, tag = 'output window, operand 0, single buffered']
    #allocation3 [shape = 's32[1]{0}', space=sflag, size = 0x4, scoped, tag = 'scoped memory for data_augmentation.1']
    %8 = vsyncpa [#allocation3], 0
    // Predicated region
    $region2: #{data_augmentation.1} parent=1 // pred_check
      _
    $region3: #{data_augmentation.1} parent=1 // pred_check_branch
      %10 = sbr.rel (0) target = $region5
    $region4: #{data_augmentation.1} parent=1 // pred_region
      _
    $region5: #{data_augmentation.1} parent=1 // pred_fallthru
      _
    // Predicated region
    $region6: #{data_augmentation.1} parent=1 // pred_check
      _
    $region7: #{data_augmentation.1} parent=1 // pred_check_branch
      %12 = sbr.rel (0) target = $region9
    $region8: #{data_augmentation.1} parent=1 // pred_region
      _
    $region9: #{data_augmentation.1} parent=1 // pred_fallthru
      _
    // Predicated region
    $region10: #{data_augmentation.1} parent=1 // pred_check
      _
    $region11: #{data_augmentation.1} parent=1 // pred_check_branch
      %14 = sbr.rel (0) target = $region13
    $region12: #{data_augmentation.1} parent=1 // pred_region
      _
    $region13: #{data_augmentation.1} parent=1 // pred_fallthru
      _
    %v15 = vld [vmem:[%s0] sm:$0xff]
    %v16 = vld [vmem:[%s0 + $0x8] sm:$0xff]
    %v17 = vld [vmem:[%s0 + $0x10] sm:$0xff]
    %v18 = vld [vmem:[%s0 + $0x18] sm:$0xff]
    %v19 = vld [vmem:[%s0 + $0x20] sm:$0xff]
    %v20 = vld [vmem:[%s0 + $0x28] sm:$0xff]
    %v21 = vld [vmem:[%s0 + $0x30] sm:$0xff]
    %v22 = vld [vmem:[%s0 + $0x38] sm:$0xff]
    %v23 = vld [vmem:[%s0 + $0x40] sm:$0xff]
    %v24 = vld [vmem:[%s0 + $0x48] sm:$0xff]
    %v25 = vld [vmem:[%s0 + $0x50] sm:$0xff]
    %v26 = vld [vmem:[%s0 + $0x58] sm:$0xff]
    %v27 = vld [vmem:[%s0 + $0x60] sm:$0xff]
    %v28 = vld [vmem:[%s0 + $0x68] sm:$0xff]
    %v29 = vld [vmem:[%s0 + $0x70] sm:$0xff]
    %v30 = vld [vmem:[%s0 + $0x78] sm:$0xff]
    %v31 = vld [vmem:[%s2] sm:$0xff]
    %v32 = vld [vmem:[%s2 + $0x8] sm:$0xff]
    %v33 = vld [vmem:[%s2 + $0x10] sm:$0xff]
    %v34 = vld [vmem:[%s2 + $0x18] sm:$0xff]
    %v35 = vld [vmem:[%s2 + $0x20] sm:$0xff]
    %v36 = vld [vmem:[%s2 + $0x28] sm:$0xff]
    %v37 = vld [vmem:[%s2 + $0x30] sm:$0xff]
    %v38 = vld [vmem:[%s2 + $0x38] sm:$0xff]
    %v39 = vld [vmem:[%s2 + $0x40] sm:$0xff]
    %v40 = vld [vmem:[%s2 + $0x48] sm:$0xff]
    %v41 = vld [vmem:[%s2 + $0x50] sm:$0xff]
    %v42 = vld [vmem:[%s2 + $0x58] sm:$0xff]
    %v43 = vld [vmem:[%s2 + $0x60] sm:$0xff]
    %v44 = vld [vmem:[%s2 + $0x68] sm:$0xff]
    %v45 = vld [vmem:[%s2 + $0x70] sm:$0xff]
    %v46 = vld [vmem:[%s2 + $0x78] sm:$0xff]
    %v47 = vld [vmem:[%s1] sm:$0xff]
    %v48 = vld [vmem:[%s1 + $0x8] sm:$0xff]
    %v49 = vld [vmem:[%s1 + $0x10] sm:$0xff]
    %v50 = vld [vmem:[%s1 + $0x18] sm:$0xff]
    %v51 = vld [vmem:[%s1 + $0x20] sm:$0xff]
    %v52 = vld [vmem:[%s1 + $0x28] sm:$0xff]
    %v53 = vld [vmem:[%s1 + $0x30] sm:$0xff]
    %v54 = vld [vmem:[%s1 + $0x38] sm:$0xff]
    %v55 = vld [vmem:[%s1 + $0x40] sm:$0xff]
    %v56 = vld [vmem:[%s1 + $0x48] sm:$0xff]
    %v57 = vld [vmem:[%s1 + $0x50] sm:$0xff]
    %v58 = vld [vmem:[%s1 + $0x58] sm:$0xff]
    %v59 = vld [vmem:[%s1 + $0x60] sm:$0xff]
    %v60 = vld [vmem:[%s1 + $0x68] sm:$0xff]
    %v61 = vld [vmem:[%s1 + $0x70] sm:$0xff]
    %v62 = vld [vmem:[%s1 + $0x78] sm:$0xff]
    %63 = vmatprep.subr.mxu0 0.0
    %64 = vmatpush1.msra.mxu0 %v47
    %65 = vmatprep.subr.mxu0 0.0
    %66 = vmatpush1.msra.mxu0 %v48
    %67 = vmatprep.subr.mxu0 0.0
    %68 = vmatpush1.msra.mxu0 %v49
    %69 = vmatprep.subr.mxu0 0.0
    %70 = vmatpush1.msra.mxu0 %v50
    %71 = vmatprep.subr.mxu0 0.0
    %72 = vmatpush1.msra.mxu0 %v51
    %73 = vmatprep.subr.mxu0 0.0
    %74 = vmatpush1.msra.mxu0 %v52
    %75 = vmatprep.subr.mxu0 0.0
    %76 = vmatpush1.msra.mxu0 %v53
    %77 = vmatprep.subr.mxu0 0.0
    %78 = vmatpush1.msra.mxu0 %v54
    %79 = vmatprep.subr.mxu0 0.0
    %80 = vmatpush1.msra.mxu0 %v55
    %81 = vmatprep.subr.mxu0 0.0
    %82 = vmatpush1.msra.mxu0 %v56
    %83 = vmatprep.subr.mxu0 0.0
    %84 = vmatpush1.msra.mxu0 %v57
    %85 = vmatprep.subr.mxu0 0.0
    %86 = vmatpush1.msra.mxu0 %v58
    %87 = vmatprep.subr.mxu0 0.0
    %88 = vmatpush1.msra.mxu0 %v59
    %89 = vmatprep.subr.mxu0 0.0
    %90 = vmatpush1.msra.mxu0 %v60
    %91 = vmatprep.subr.mxu0 0.0
    %92 = vmatpush1.msra.mxu0 %v61
    %93 = vmatprep.subr.mxu0 0.0
    %94 = vmatpush1.msra.mxu0 %v62
    %95 = vmatprep.subr.mxu0 0.0
    %96 = vmatpush1.msra.mxu0 0.0
    %97 = vmatprep.subr.mxu0 0.0
    %98 = vmatpush1.msra.mxu0 0.0
    %99 = vmatprep.subr.mxu0 0.0
    %100 = vmatpush1.msra.mxu0 0.0
    %101 = vmatprep.subr.mxu0 0.0
    %102 = vmatpush1.msra.mxu0 0.0
    %103 = vmatprep.subr.mxu0 0.0
    %104 = vmatpush1.msra.mxu0 0.0
    %105 = vmatprep.subr.mxu0 0.0
    %106 = vmatpush1.msra.mxu0 0.0
    %107 = vmatprep.subr.mxu0 0.0
    %108 = vmatpush1.msra.mxu0 0.0
    %109 = vmatprep.subr.mxu0 0.0
    %110 = vmatpush1.msra.mxu0 0.0
    %111 = vmatprep.subr.mxu0 0.0
    %112 = vmatpush1.msra.mxu0 0.0
    %113 = vmatprep.subr.mxu0 0.0
    %114 = vmatpush1.msra.mxu0 0.0
    %115 = vmatprep.subr.mxu0 0.0
    %116 = vmatpush1.msra.mxu0 0.0
    %117 = vmatprep.subr.mxu0 0.0
    %118 = vmatpush1.msra.mxu0 0.0
    %119 = vmatprep.subr.mxu0 0.0
    %120 = vmatpush1.msra.mxu0 0.0
    %121 = vmatprep.subr.mxu0 0.0
    %122 = vmatpush1.msra.mxu0 0.0
    %123 = vmatprep.subr.mxu0 0.0
    %124 = vmatpush1.msra.mxu0 0.0
    %125 = vmatprep.subr.mxu0 0.0
    %126 = vmatpush1.msra.mxu0 0.0
    %127 = vmatprep.mubr.f32.mxu0 0.0
    %128 = vmatmul.mubr.f32.gmra.mrb[0].mxu0 %v15
    %v129 = vpop.f32.mrb[0].mxu0
    %v130 = vadd.f32 0.0, %v129
    %v131 = vpop.f32.mrb[0].mxu0
    %132 = vmatprep.mubr.f32.mxu0 0.0
    %133 = vmatmul.mubr.f32.gmra.mrb[0].mxu0 %v16
    %v134 = vpop.f32.mrb[0].mxu0
    %v135 = vadd.f32 0.0, %v134
    %v136 = vpop.f32.mrb[0].mxu0
    %137 = vmatprep.mubr.f32.mxu0 0.0
    %138 = vmatmul.mubr.f32.gmra.mrb[0].mxu0 %v17
    %v139 = vpop.f32.mrb[0].mxu0
    %v140 = vadd.f32 0.0, %v139
    %v141 = vpop.f32.mrb[0].mxu0
    %142 = vmatprep.mubr.f32.mxu0 0.0
    %143 = vmatmul.mubr.f32.gmra.mrb[0].mxu0 %v18
    %v144 = vpop.f32.mrb[0].mxu0
    %v145 = vadd.f32 0.0, %v144
    %v146 = vpop.f32.mrb[0].mxu0
    %147 = vmatprep.mubr.f32.mxu0 0.0
    %148 = vmatmul.mubr.f32.gmra.mrb[0].mxu0 %v19
    %v149 = vpop.f32.mrb[0].mxu0
    %v150 = vadd.f32 0.0, %v149
    %v151 = vpop.f32.mrb[0].mxu0
    %152 = vmatprep.mubr.f32.mxu0 0.0
    %153 = vmatmul.mubr.f32.gmra.mrb[0].mxu0 %v20
    %v154 = vpop.f32.mrb[0].mxu0
    %v155 = vadd.f32 0.0, %v154
    %v156 = vpop.f32.mrb[0].mxu0
    %157 = vmatprep.mubr.f32.mxu0 0.0
    %158 = vmatmul.mubr.f32.gmra.mrb[0].mxu0 %v21
    %v159 = vpop.f32.mrb[0].mxu0
    %v160 = vadd.f32 0.0, %v159
    %v161 = vpop.f32.mrb[0].mxu0
    %162 = vmatprep.mubr.f32.mxu0 0.0
    %163 = vmatmul.mubr.f32.gmra.mrb[0].mxu0 %v22
    %v164 = vpop.f32.mrb[0].mxu0
    %v165 = vadd.f32 0.0, %v164
    %v166 = vpop.f32.mrb[0].mxu0
    %167 = vmatprep.mubr.f32.mxu0 0.0
    %168 = vmatmul.mubr.f32.gmra.mrb[0].mxu0 %v23
    %v169 = vpop.f32.mrb[0].mxu0
    %v170 = vadd.f32 0.0, %v169
    %v171 = vpop.f32.mrb[0].mxu0
    %172 = vmatprep.mubr.f32.mxu0 0.0
    %173 = vmatmul.mubr.f32.gmra.mrb[0].mxu0 %v24
    %v174 = vpop.f32.mrb[0].mxu0
    %v175 = vadd.f32 0.0, %v174
    %v176 = vpop.f32.mrb[0].mxu0
    %177 = vmatprep.mubr.f32.mxu0 0.0
    %178 = vmatmul.mubr.f32.gmra.mrb[0].mxu0 %v25
    %v179 = vpop.f32.mrb[0].mxu0
    %v180 = vadd.f32 0.0, %v179
    %v181 = vpop.f32.mrb[0].mxu0
    %182 = vmatprep.mubr.f32.mxu0 0.0
    %183 = vmatmul.mubr.f32.gmra.mrb[0].mxu0 %v26
    %v184 = vpop.f32.mrb[0].mxu0
    %v185 = vadd.f32 0.0, %v184
    %v186 = vpop.f32.mrb[0].mxu0
    %187 = vmatprep.mubr.f32.mxu0 0.0
    %188 = vmatmul.mubr.f32.gmra.mrb[0].mxu0 %v27
    %v189 = vpop.f32.mrb[0].mxu0
    %v190 = vadd.f32 0.0, %v189
    %v191 = vpop.f32.mrb[0].mxu0
    %192 = vmatprep.mubr.f32.mxu0 0.0
    %193 = vmatmul.mubr.f32.gmra.mrb[0].mxu0 %v28
    %v194 = vpop.f32.mrb[0].mxu0
    %v195 = vadd.f32 0.0, %v194
    %v196 = vpop.f32.mrb[0].mxu0
    %197 = vmatprep.mubr.f32.mxu0 0.0
    %198 = vmatmul.mubr.f32.gmra.mrb[0].mxu0 %v29
    %v199 = vpop.f32.mrb[0].mxu0
    %v200 = vadd.f32 0.0, %v199
    %v201 = vpop.f32.mrb[0].mxu0
    %202 = vmatprep.mubr.f32.mxu0 0.0
    %203 = vmatmul.mubr.f32.gmra.mrb[0].mxu0 %v30
    %v204 = vpop.f32.mrb[0].mxu0
    %v205 = vadd.f32 0.0, %v204
    %v206 = vpop.f32.mrb[0].mxu0
    %207 = vdwg.mxu0
    %s208 = scalar_lea.vmem %s1, 128
    %v209 = vld [vmem:[%s208] sm:$0xff]
    %v210 = vld [vmem:[%s208 + $0x8] sm:$0xff]
    %v211 = vld [vmem:[%s208 + $0x10] sm:$0xff]
    %v212 = vld [vmem:[%s208 + $0x18] sm:$0xff]
    %v213 = vld [vmem:[%s208 + $0x20] sm:$0xff]
    %v214 = vld [vmem:[%s208 + $0x28] sm:$0xff]
    %v215 = vld [vmem:[%s208 + $0x30] sm:$0xff]
    %v216 = vld [vmem:[%s208 + $0x38] sm:$0xff]
    %v217 = vld [vmem:[%s208 + $0x40] sm:$0xff]
    %v218 = vld [vmem:[%s208 + $0x48] sm:$0xff]
    %v219 = vld [vmem:[%s208 + $0x50] sm:$0xff]
    %v220 = vld [vmem:[%s208 + $0x58] sm:$0xff]
    %v221 = vld [vmem:[%s208 + $0x60] sm:$0xff]
    %v222 = vld [vmem:[%s208 + $0x68] sm:$0xff]
    %v223 = vld [vmem:[%s208 + $0x70] sm:$0xff]
    %v224 = vld [vmem:[%s208 + $0x78] sm:$0xff]
    %225 = vmatprep.subr.mxu0 0.0
    %226 = vmatpush1.msra.mxu0 %v209
    %227 = vmatprep.subr.mxu0 0.0
    %228 = vmatpush1.msra.mxu0 %v210
    %229 = vmatprep.subr.mxu0 0.0
    %230 = vmatpush1.msra.mxu0 %v211
    %231 = vmatprep.subr.mxu0 0.0
    %232 = vmatpush1.msra.mxu0 %v212
    %233 = vmatprep.subr.mxu0 0.0
    %234 = vmatpush1.msra.mxu0 %v213
    %235 = vmatprep.subr.mxu0 0.0
    %236 = vmatpush1.msra.mxu0 %v214
    %237 = vmatprep.subr.mxu0 0.0
    %238 = vmatpush1.msra.mxu0 %v215
    %239 = vmatprep.subr.mxu0 0.0
    %240 = vmatpush1.msra.mxu0 %v216
    %241 = vmatprep.subr.mxu0 0.0
    %242 = vmatpush1.msra.mxu0 %v217
    %243 = vmatprep.subr.mxu0 0.0
    %244 = vmatpush1.msra.mxu0 %v218
    %245 = vmatprep.subr.mxu0 0.0
    %246 = vmatpush1.msra.mxu0 %v219
    %247 = vmatprep.subr.mxu0 0.0
    %248 = vmatpush1.msra.mxu0 %v220
    %249 = vmatprep.subr.mxu0 0.0
    %250 = vmatpush1.msra.mxu0 %v221
    %251 = vmatprep.subr.mxu0 0.0
    %252 = vmatpush1.msra.mxu0 %v222
    %253 = vmatprep.subr.mxu0 0.0
    %254 = vmatpush1.msra.mxu0 %v223
    %255 = vmatprep.subr.mxu0 0.0
    %256 = vmatpush1.msra.mxu0 %v224
    %257 = vmatprep.subr.mxu0 0.0
    %258 = vmatpush1.msra.mxu0 0.0
    %259 = vmatprep.subr.mxu0 0.0
    %260 = vmatpush1.msra.mxu0 0.0
    %261 = vmatprep.subr.mxu0 0.0
    %262 = vmatpush1.msra.mxu0 0.0
    %263 = vmatprep.subr.mxu0 0.0
    %264 = vmatpush1.msra.mxu0 0.0
    %265 = vmatprep.subr.mxu0 0.0
    %266 = vmatpush1.msra.mxu0 0.0
    %267 = vmatprep.subr.mxu0 0.0
    %268 = vmatpush1.msra.mxu0 0.0
    %269 = vmatprep.subr.mxu0 0.0
    %270 = vmatpush1.msra.mxu0 0.0
    %271 = vmatprep.subr.mxu0 0.0
    %272 = vmatpush1.msra.mxu0 0.0
    %273 = vmatprep.subr.mxu0 0.0
    %274 = vmatpush1.msra.mxu0 0.0
    %275 = vmatprep.subr.mxu0 0.0
    %276 = vmatpush1.msra.mxu0 0.0
    %277 = vmatprep.subr.mxu0 0.0
    %278 = vmatpush1.msra.mxu0 0.0
    %279 = vmatprep.subr.mxu0 0.0
    %280 = vmatpush1.msra.mxu0 0.0
    %281 = vmatprep.subr.mxu0 0.0
    %282 = vmatpush1.msra.mxu0 0.0
    %283 = vmatprep.subr.mxu0 0.0
    %284 = vmatpush1.msra.mxu0 0.0
    %285 = vmatprep.subr.mxu0 0.0
    %286 = vmatpush1.msra.mxu0 0.0
    %287 = vmatprep.subr.mxu0 0.0
    %288 = vmatpush1.msra.mxu0 0.0
    %289 = vmatprep.mubr.f32.mxu0 0.0
    %290 = vmatmul.mubr.f32.gmra.mrb[0].mxu0 %v15
    %v291 = vpop.f32.mrb[0].mxu0
    %v292 = vadd.f32 0.0, %v291
    %v293 = vpop.f32.mrb[0].mxu0
    %294 = vmatprep.mubr.f32.mxu0 0.0
    %295 = vmatmul.mubr.f32.gmra.mrb[0].mxu0 %v16
    %v296 = vpop.f32.mrb[0].mxu0
    %v297 = vadd.f32 0.0, %v296
    %v298 = vpop.f32.mrb[0].mxu0
    %299 = vmatprep.mubr.f32.mxu0 0.0
    %300 = vmatmul.mubr.f32.gmra.mrb[0].mxu0 %v17
    %v301 = vpop.f32.mrb[0].mxu0
    %v302 = vadd.f32 0.0, %v301
    %v303 = vpop.f32.mrb[0].mxu0
    %304 = vmatprep.mubr.f32.mxu0 0.0
    %305 = vmatmul.mubr.f32.gmra.mrb[0].mxu0 %v18
    %v306 = vpop.f32.mrb[0].mxu0
    %v307 = vadd.f32 0.0, %v306
    %v308 = vpop.f32.mrb[0].mxu0
    %309 = vmatprep.mubr.f32.mxu0 0.0
    %310 = vmatmul.mubr.f32.gmra.mrb[0].mxu0 %v19
    %v311 = vpop.f32.mrb[0].mxu0
    %v312 = vadd.f32 0.0, %v311
    %v313 = vpop.f32.mrb[0].mxu0
    %314 = vmatprep.mubr.f32.mxu0 0.0
    %315 = vmatmul.mubr.f32.gmra.mrb[0].mxu0 %v20
    %v316 = vpop.f32.mrb[0].mxu0
    %v317 = vadd.f32 0.0, %v316
    %v318 = vpop.f32.mrb[0].mxu0
    %319 = vmatprep.mubr.f32.mxu0 0.0
    %320 = vmatmul.mubr.f32.gmra.mrb[0].mxu0 %v21
    %v321 = vpop.f32.mrb[0].mxu0
    %v322 = vadd.f32 0.0, %v321
    %v323 = vpop.f32.mrb[0].mxu0
    %324 = vmatprep.mubr.f32.mxu0 0.0
    %325 = vmatmul.mubr.f32.gmra.mrb[0].mxu0 %v22
    %v326 = vpop.f32.mrb[0].mxu0
    %v327 = vadd.f32 0.0, %v326
    %v328 = vpop.f32.mrb[0].mxu0
    %329 = vmatprep.mubr.f32.mxu0 0.0
    %330 = vmatmul.mubr.f32.gmra.mrb[0].mxu0 %v23
    %v331 = vpop.f32.mrb[0].mxu0
    %v332 = vadd.f32 0.0, %v331
    %v333 = vpop.f32.mrb[0].mxu0
    %334 = vmatprep.mubr.f32.mxu0 0.0
    %335 = vmatmul.mubr.f32.gmra.mrb[0].mxu0 %v24
    %v336 = vpop.f32.mrb[0].mxu0
    %v337 = vadd.f32 0.0, %v336
    %v338 = vpop.f32.mrb[0].mxu0
    %339 = vmatprep.mubr.f32.mxu0 0.0
    %340 = vmatmul.mubr.f32.gmra.mrb[0].mxu0 %v25
    %v341 = vpop.f32.mrb[0].mxu0
    %v342 = vadd.f32 0.0, %v341
    %v343 = vpop.f32.mrb[0].mxu0
    %344 = vmatprep.mubr.f32.mxu0 0.0
    %345 = vmatmul.mubr.f32.gmra.mrb[0].mxu0 %v26
    %v346 = vpop.f32.mrb[0].mxu0
    %v347 = vadd.f32 0.0, %v346
    %v348 = vpop.f32.mrb[0].mxu0
    %349 = vmatprep.mubr.f32.mxu0 0.0
    %350 = vmatmul.mubr.f32.gmra.mrb[0].mxu0 %v27
    %v351 = vpop.f32.mrb[0].mxu0
    %v352 = vadd.f32 0.0, %v351
    %v353 = vpop.f32.mrb[0].mxu0
    %354 = vmatprep.mubr.f32.mxu0 0.0
    %355 = vmatmul.mubr.f32.gmra.mrb[0].mxu0 %v28
    %v356 = vpop.f32.mrb[0].mxu0
    %v357 = vadd.f32 0.0, %v356
    %v358 = vpop.f32.mrb[0].mxu0
    %359 = vmatprep.mubr.f32.mxu0 0.0
    %360 = vmatmul.mubr.f32.gmra.mrb[0].mxu0 %v29
    %v361 = vpop.f32.mrb[0].mxu0
    %v362 = vadd.f32 0.0, %v361
    %v363 = vpop.f32.mrb[0].mxu0
    %364 = vmatprep.mubr.f32.mxu0 0.0
    %365 = vmatmul.mubr.f32.gmra.mrb[0].mxu0 %v30
    %v366 = vpop.f32.mrb[0].mxu0
    %v367 = vadd.f32 0.0, %v366
    %v368 = vpop.f32.mrb[0].mxu0
    %369 = vdwg.mxu0
    %s370 = scalar_lea.vmem %s1, 256
    %v371 = vld [vmem:[%s370] sm:$0xff]
    %v372 = vld [vmem:[%s370 + $0x8] sm:$0xff]
    %v373 = vld [vmem:[%s370 + $0x10] sm:$0xff]
    %v374 = vld [vmem:[%s370 + $0x18] sm:$0xff]
    %v375 = vld [vmem:[%s370 + $0x20] sm:$0xff]
    %v376 = vld [vmem:[%s370 + $0x28] sm:$0xff]
    %v377 = vld [vmem:[%s370 + $0x30] sm:$0xff]
    %v378 = vld [vmem:[%s370 + $0x38] sm:$0xff]
    %v379 = vld [vmem:[%s370 + $0x40] sm:$0xff]
    %v380 = vld [vmem:[%s370 + $0x48] sm:$0xff]
    %v381 = vld [vmem:[%s370 + $0x50] sm:$0xff]
    %v382 = vld [vmem:[%s370 + $0x58] sm:$0xff]
    %v383 = vld [vmem:[%s370 + $0x60] sm:$0xff]
    %v384 = vld [vmem:[%s370 + $0x68] sm:$0xff]
    %v385 = vld [vmem:[%s370 + $0x70] sm:$0xff]
    %v386 = vld [vmem:[%s370 + $0x78] sm:$0xff]
    %387 = vmatprep.subr.mxu0 0.0
    %388 = vmatpush1.msra.mxu0 %v371
    %389 = vmatprep.subr.mxu0 0.0
    %390 = vmatpush1.msra.mxu0 %v372
    %391 = vmatprep.subr.mxu0 0.0
    %392 = vmatpush1.msra.mxu0 %v373
    %393 = vmatprep.subr.mxu0 0.0
    %394 = vmatpush1.msra.mxu0 %v374
    %395 = vmatprep.subr.mxu0 0.0
    %396 = vmatpush1.msra.mxu0 %v375
    %397 = vmatprep.subr.mxu0 0.0
    %398 = vmatpush1.msra.mxu0 %v376
    %399 = vmatprep.subr.mxu0 0.0
    %400 = vmatpush1.msra.mxu0 %v377
    %401 = vmatprep.subr.mxu0 0.0
    %402 = vmatpush1.msra.mxu0 %v378
    %403 = vmatprep.subr.mxu0 0.0
    %404 = vmatpush1.msra.mxu0 %v379
    %405 = vmatprep.subr.mxu0 0.0
    %406 = vmatpush1.msra.mxu0 %v380
    %407 = vmatprep.subr.mxu0 0.0
    %408 = vmatpush1.msra.mxu0 %v381
    %409 = vmatprep.subr.mxu0 0.0
    %410 = vmatpush1.msra.mxu0 %v382
    %411 = vmatprep.subr.mxu0 0.0
    %412 = vmatpush1.msra.mxu0 %v383
    %413 = vmatprep.subr.mxu0 0.0
    %414 = vmatpush1.msra.mxu0 %v384
    %415 = vmatprep.subr.mxu0 0.0
    %416 = vmatpush1.msra.mxu0 %v385
    %417 = vmatprep.subr.mxu0 0.0
    %418 = vmatpush1.msra.mxu0 %v386
    %419 = vmatprep.subr.mxu0 0.0
    %420 = vmatpush1.msra.mxu0 0.0
    %421 = vmatprep.subr.mxu0 0.0
    %422 = vmatpush1.msra.mxu0 0.0
    %423 = vmatprep.subr.mxu0 0.0
    %424 = vmatpush1.msra.mxu0 0.0
    %425 = vmatprep.subr.mxu0 0.0
    %426 = vmatpush1.msra.mxu0 0.0
    %427 = vmatprep.subr.mxu0 0.0
    %428 = vmatpush1.msra.mxu0 0.0
    %429 = vmatprep.subr.mxu0 0.0
    %430 = vmatpush1.msra.mxu0 0.0
    %431 = vmatprep.subr.mxu0 0.0
    %432 = vmatpush1.msra.mxu0 0.0
    %433 = vmatprep.subr.mxu0 0.0
    %434 = vmatpush1.msra.mxu0 0.0
    %435 = vmatprep.subr.mxu0 0.0
    %436 = vmatpush1.msra.mxu0 0.0
    %437 = vmatprep.subr.mxu0 0.0
    %438 = vmatpush1.msra.mxu0 0.0
    %439 = vmatprep.subr.mxu0 0.0
    %440 = vmatpush1.msra.mxu0 0.0
    %441 = vmatprep.subr.mxu0 0.0
    %442 = vmatpush1.msra.mxu0 0.0
    %443 = vmatprep.subr.mxu0 0.0
    %444 = vmatpush1.msra.mxu0 0.0
    %445 = vmatprep.subr.mxu0 0.0
    %446 = vmatpush1.msra.mxu0 0.0
    %447 = vmatprep.subr.mxu0 0.0
    %448 = vmatpush1.msra.mxu0 0.0
    %449 = vmatprep.subr.mxu0 0.0
    %450 = vmatpush1.msra.mxu0 0.0
    %451 = vmatprep.mubr.f32.mxu0 0.0
    %452 = vmatmul.mubr.f32.gmra.mrb[0].mxu0 %v15
    %v453 = vpop.f32.mrb[0].mxu0
    %v454 = vadd.f32 0.0, %v453
    %v455 = vpop.f32.mrb[0].mxu0
    %456 = vmatprep.mubr.f32.mxu0 0.0
    %457 = vmatmul.mubr.f32.gmra.mrb[0].mxu0 %v16
    %v458 = vpop.f32.mrb[0].mxu0
    %v459 = vadd.f32 0.0, %v458
    %v460 = vpop.f32.mrb[0].mxu0
    %461 = vmatprep.mubr.f32.mxu0 0.0
    %462 = vmatmul.mubr.f32.gmra.mrb[0].mxu0 %v17
    %v463 = vpop.f32.mrb[0].mxu0
    %v464 = vadd.f32 0.0, %v463
    %v465 = vpop.f32.mrb[0].mxu0
    %466 = vmatprep.mubr.f32.mxu0 0.0
    %467 = vmatmul.mubr.f32.gmra.mrb[0].mxu0 %v18
    %v468 = vpop.f32.mrb[0].mxu0
    %v469 = vadd.f32 0.0, %v468
    %v470 = vpop.f32.mrb[0].mxu0
    %471 = vmatprep.mubr.f32.mxu0 0.0
    %472 = vmatmul.mubr.f32.gmra.mrb[0].mxu0 %v19
    %v473 = vpop.f32.mrb[0].mxu0
    %v474 = vadd.f32 0.0, %v473
    %v475 = vpop.f32.mrb[0].mxu0
    %476 = vmatprep.mubr.f32.mxu0 0.0
    %477 = vmatmul.mubr.f32.gmra.mrb[0].mxu0 %v20
    %v478 = vpop.f32.mrb[0].mxu0
    %v479 = vadd.f32 0.0, %v478
    %v480 = vpop.f32.mrb[0].mxu0
    %481 = vmatprep.mubr.f32.mxu0 0.0
    %482 = vmatmul.mubr.f32.gmra.mrb[0].mxu0 %v21
    %v483 = vpop.f32.mrb[0].mxu0
    %v484 = vadd.f32 0.0, %v483
    %v485 = vpop.f32.mrb[0].mxu0
    %486 = vmatprep.mubr.f32.mxu0 0.0
    %487 = vmatmul.mubr.f32.gmra.mrb[0].mxu0 %v22
    %v488 = vpop.f32.mrb[0].mxu0
    %v489 = vadd.f32 0.0, %v488
    %v490 = vpop.f32.mrb[0].mxu0
    %491 = vmatprep.mubr.f32.mxu0 0.0
    %492 = vmatmul.mubr.f32.gmra.mrb[0].mxu0 %v23
    %v493 = vpop.f32.mrb[0].mxu0
    %v494 = vadd.f32 0.0, %v493
    %v495 = vpop.f32.mrb[0].mxu0
    %496 = vmatprep.mubr.f32.mxu0 0.0
    %497 = vmatmul.mubr.f32.gmra.mrb[0].mxu0 %v24
    %v498 = vpop.f32.mrb[0].mxu0
    %v499 = vadd.f32 0.0, %v498
    %v500 = vpop.f32.mrb[0].mxu0
    %501 = vmatprep.mubr.f32.mxu0 0.0
    %502 = vmatmul.mubr.f32.gmra.mrb[0].mxu0 %v25
    %v503 = vpop.f32.mrb[0].mxu0
    %v504 = vadd.f32 0.0, %v503
    %v505 = vpop.f32.mrb[0].mxu0
    %506 = vmatprep.mubr.f32.mxu0 0.0
    %507 = vmatmul.mubr.f32.gmra.mrb[0].mxu0 %v26
    %v508 = vpop.f32.mrb[0].mxu0
    %v509 = vadd.f32 0.0, %v508
    %v510 = vpop.f32.mrb[0].mxu0
    %511 = vmatprep.mubr.f32.mxu0 0.0
    %512 = vmatmul.mubr.f32.gmra.mrb[0].mxu0 %v27
    %v513 = vpop.f32.mrb[0].mxu0
    %v514 = vadd.f32 0.0, %v513
    %v515 = vpop.f32.mrb[0].mxu0
    %516 = vmatprep.mubr.f32.mxu0 0.0
    %517 = vmatmul.mubr.f32.gmra.mrb[0].mxu0 %v28
    %v518 = vpop.f32.mrb[0].mxu0
    %v519 = vadd.f32 0.0, %v518
    %v520 = vpop.f32.mrb[0].mxu0
    %521 = vmatprep.mubr.f32.mxu0 0.0
    %522 = vmatmul.mubr.f32.gmra.mrb[0].mxu0 %v29
    %v523 = vpop.f32.mrb[0].mxu0
    %v524 = vadd.f32 0.0, %v523
    %v525 = vpop.f32.mrb[0].mxu0
    %526 = vmatprep.mubr.f32.mxu0 0.0
    %527 = vmatmul.mubr.f32.gmra.mrb[0].mxu0 %v30
    %v528 = vpop.f32.mrb[0].mxu0
    %v529 = vadd.f32 0.0, %v528
    %v530 = vpop.f32.mrb[0].mxu0
    %531 = vdwg.mxu0
    %532 = vmatprep.subr.mxu0 0.0
    %533 = vmatpush1.msra.mxu0 %v31
    %534 = vmatprep.subr.mxu0 0.0
    %535 = vmatpush1.msra.mxu0 %v32
    %536 = vmatprep.subr.mxu0 0.0
    %537 = vmatpush1.msra.mxu0 %v33
    %538 = vmatprep.subr.mxu0 0.0
    %539 = vmatpush1.msra.mxu0 %v34
    %540 = vmatprep.subr.mxu0 0.0
    %541 = vmatpush1.msra.mxu0 %v35
    %542 = vmatprep.subr.mxu0 0.0
    %543 = vmatpush1.msra.mxu0 %v36
    %544 = vmatprep.subr.mxu0 0.0
    %545 = vmatpush1.msra.mxu0 %v37
    %546 = vmatprep.subr.mxu0 0.0
    %547 = vmatpush1.msra.mxu0 %v38
    %548 = vmatprep.subr.mxu0 0.0
    %549 = vmatpush1.msra.mxu0 %v39
    %550 = vmatprep.subr.mxu0 0.0
    %551 = vmatpush1.msra.mxu0 %v40
    %552 = vmatprep.subr.mxu0 0.0
    %553 = vmatpush1.msra.mxu0 %v41
    %554 = vmatprep.subr.mxu0 0.0
    %555 = vmatpush1.msra.mxu0 %v42
    %556 = vmatprep.subr.mxu0 0.0
    %557 = vmatpush1.msra.mxu0 %v43
    %558 = vmatprep.subr.mxu0 0.0
    %559 = vmatpush1.msra.mxu0 %v44
    %560 = vmatprep.subr.mxu0 0.0
    %561 = vmatpush1.msra.mxu0 %v45
    %562 = vmatprep.subr.mxu0 0.0
    %563 = vmatpush1.msra.mxu0 %v46
    %564 = vmatprep.subr.mxu0 0.0
    %565 = vmatpush1.msra.mxu0 0.0
    %566 = vmatprep.subr.mxu0 0.0
    %567 = vmatpush1.msra.mxu0 0.0
    %568 = vmatprep.subr.mxu0 0.0
    %569 = vmatpush1.msra.mxu0 0.0
    %570 = vmatprep.subr.mxu0 0.0
    %571 = vmatpush1.msra.mxu0 0.0
    %572 = vmatprep.subr.mxu0 0.0
    %573 = vmatpush1.msra.mxu0 0.0
    %574 = vmatprep.subr.mxu0 0.0
    %575 = vmatpush1.msra.mxu0 0.0
    %576 = vmatprep.subr.mxu0 0.0
    %577 = vmatpush1.msra.mxu0 0.0
    %578 = vmatprep.subr.mxu0 0.0
    %579 = vmatpush1.msra.mxu0 0.0
    %580 = vmatprep.subr.mxu0 0.0
    %581 = vmatpush1.msra.mxu0 0.0
    %582 = vmatprep.subr.mxu0 0.0
    %583 = vmatpush1.msra.mxu0 0.0
    %584 = vmatprep.subr.mxu0 0.0
    %585 = vmatpush1.msra.mxu0 0.0
    %586 = vmatprep.subr.mxu0 0.0
    %587 = vmatpush1.msra.mxu0 0.0
    %588 = vmatprep.subr.mxu0 0.0
    %589 = vmatpush1.msra.mxu0 0.0
    %590 = vmatprep.subr.mxu0 0.0
    %591 = vmatpush1.msra.mxu0 0.0
    %592 = vmatprep.subr.mxu0 0.0
    %593 = vmatpush1.msra.mxu0 0.0
    %594 = vmatprep.subr.mxu0 0.0
    %595 = vmatpush1.msra.mxu0 0.0
    %596 = vmatprep.mubr.f32.mxu0 0.0
    %597 = vmatmul.mubr.f32.gmra.mrb[0].mxu0 %v130
    %v598 = vpop.f32.mrb[0].mxu0
    %v599 = vadd.f32 0.0, %v598
    %v600 = vpop.f32.mrb[0].mxu0
    %601 = vmatprep.mubr.f32.mxu0 0.0
    %602 = vmatmul.mubr.f32.gmra.mrb[0].mxu0 %v135
    %v603 = vpop.f32.mrb[0].mxu0
    %v604 = vadd.f32 0.0, %v603
    %v605 = vpop.f32.mrb[0].mxu0
    %606 = vmatprep.mubr.f32.mxu0 0.0
    %607 = vmatmul.mubr.f32.gmra.mrb[0].mxu0 %v140
    %v608 = vpop.f32.mrb[0].mxu0
    %v609 = vadd.f32 0.0, %v608
    %v610 = vpop.f32.mrb[0].mxu0
    %611 = vmatprep.mubr.f32.mxu0 0.0
    %612 = vmatmul.mubr.f32.gmra.mrb[0].mxu0 %v145
    %v613 = vpop.f32.mrb[0].mxu0
    %v614 = vadd.f32 0.0, %v613
    %v615 = vpop.f32.mrb[0].mxu0
    %616 = vmatprep.mubr.f32.mxu0 0.0
    %617 = vmatmul.mubr.f32.gmra.mrb[0].mxu0 %v150
    %v618 = vpop.f32.mrb[0].mxu0
    %v619 = vadd.f32 0.0, %v618
    %v620 = vpop.f32.mrb[0].mxu0
    %621 = vmatprep.mubr.f32.mxu0 0.0
    %622 = vmatmul.mubr.f32.gmra.mrb[0].mxu0 %v155
    %v623 = vpop.f32.mrb[0].mxu0
    %v624 = vadd.f32 0.0, %v623
    %v625 = vpop.f32.mrb[0].mxu0
    %626 = vmatprep.mubr.f32.mxu0 0.0
    %627 = vmatmul.mubr.f32.gmra.mrb[0].mxu0 %v160
    %v628 = vpop.f32.mrb[0].mxu0
    %v629 = vadd.f32 0.0, %v628
    %v630 = vpop.f32.mrb[0].mxu0
    %631 = vmatprep.mubr.f32.mxu0 0.0
    %632 = vmatmul.mubr.f32.gmra.mrb[0].mxu0 %v165
    %v633 = vpop.f32.mrb[0].mxu0
    %v634 = vadd.f32 0.0, %v633
    %v635 = vpop.f32.mrb[0].mxu0
    %636 = vmatprep.mubr.f32.mxu0 0.0
    %637 = vmatmul.mubr.f32.gmra.mrb[0].mxu0 %v170
    %v638 = vpop.f32.mrb[0].mxu0
    %v639 = vadd.f32 0.0, %v638
    %v640 = vpop.f32.mrb[0].mxu0
    %641 = vmatprep.mubr.f32.mxu0 0.0
    %642 = vmatmul.mubr.f32.gmra.mrb[0].mxu0 %v175
    %v643 = vpop.f32.mrb[0].mxu0
    %v644 = vadd.f32 0.0, %v643
    %v645 = vpop.f32.mrb[0].mxu0
    %646 = vmatprep.mubr.f32.mxu0 0.0
    %647 = vmatmul.mubr.f32.gmra.mrb[0].mxu0 %v180
    %v648 = vpop.f32.mrb[0].mxu0
    %v649 = vadd.f32 0.0, %v648
    %v650 = vpop.f32.mrb[0].mxu0
    %651 = vmatprep.mubr.f32.mxu0 0.0
    %652 = vmatmul.mubr.f32.gmra.mrb[0].mxu0 %v185
    %v653 = vpop.f32.mrb[0].mxu0
    %v654 = vadd.f32 0.0, %v653
    %v655 = vpop.f32.mrb[0].mxu0
    %656 = vmatprep.mubr.f32.mxu0 0.0
    %657 = vmatmul.mubr.f32.gmra.mrb[0].mxu0 %v190
    %v658 = vpop.f32.mrb[0].mxu0
    %v659 = vadd.f32 0.0, %v658
    %v660 = vpop.f32.mrb[0].mxu0
    %661 = vmatprep.mubr.f32.mxu0 0.0
    %662 = vmatmul.mubr.f32.gmra.mrb[0].mxu0 %v195
    %v663 = vpop.f32.mrb[0].mxu0
    %v664 = vadd.f32 0.0, %v663
    %v665 = vpop.f32.mrb[0].mxu0
    %666 = vmatprep.mubr.f32.mxu0 0.0
    %667 = vmatmul.mubr.f32.gmra.mrb[0].mxu0 %v200
    %v668 = vpop.f32.mrb[0].mxu0
    %v669 = vadd.f32 0.0, %v668
    %v670 = vpop.f32.mrb[0].mxu0
    %671 = vmatprep.mubr.f32.mxu0 0.0
    %672 = vmatmul.mubr.f32.gmra.mrb[0].mxu0 %v205
    %v673 = vpop.f32.mrb[0].mxu0
    %v674 = vadd.f32 0.0, %v673
    %v675 = vpop.f32.mrb[0].mxu0
    %676 = vmatprep.mubr.f32.mxu0 0.0
    %677 = vmatmul.mubr.f32.gmra.mrb[0].mxu0 %v292
    %v678 = vpop.f32.mrb[0].mxu0
    %v679 = vadd.f32 0.0, %v678
    %v680 = vpop.f32.mrb[0].mxu0
    %681 = vmatprep.mubr.f32.mxu0 0.0
    %682 = vmatmul.mubr.f32.gmra.mrb[0].mxu0 %v297
    %v683 = vpop.f32.mrb[0].mxu0
    %v684 = vadd.f32 0.0, %v683
    %v685 = vpop.f32.mrb[0].mxu0
    %686 = vmatprep.mubr.f32.mxu0 0.0
    %687 = vmatmul.mubr.f32.gmra.mrb[0].mxu0 %v302
    %v688 = vpop.f32.mrb[0].mxu0
    %v689 = vadd.f32 0.0, %v688
    %v690 = vpop.f32.mrb[0].mxu0
    %691 = vmatprep.mubr.f32.mxu0 0.0
    %692 = vmatmul.mubr.f32.gmra.mrb[0].mxu0 %v307
    %v693 = vpop.f32.mrb[0].mxu0
    %v694 = vadd.f32 0.0, %v693
    %v695 = vpop.f32.mrb[0].mxu0
    %696 = vmatprep.mubr.f32.mxu0 0.0
    %697 = vmatmul.mubr.f32.gmra.mrb[0].mxu0 %v312
    %v698 = vpop.f32.mrb[0].mxu0
    %v699 = vadd.f32 0.0, %v698
    %v700 = vpop.f32.mrb[0].mxu0
    %701 = vmatprep.mubr.f32.mxu0 0.0
    %702 = vmatmul.mubr.f32.gmra.mrb[0].mxu0 %v317
    %v703 = vpop.f32.mrb[0].mxu0
    %v704 = vadd.f32 0.0, %v703
    %v705 = vpop.f32.mrb[0].mxu0
    %706 = vmatprep.mubr.f32.mxu0 0.0
    %707 = vmatmul.mubr.f32.gmra.mrb[0].mxu0 %v322
    %v708 = vpop.f32.mrb[0].mxu0
    %v709 = vadd.f32 0.0, %v708
    %v710 = vpop.f32.mrb[0].mxu0
    %711 = vmatprep.mubr.f32.mxu0 0.0
    %712 = vmatmul.mubr.f32.gmra.mrb[0].mxu0 %v327
    %v713 = vpop.f32.mrb[0].mxu0
    %v714 = vadd.f32 0.0, %v713
    %v715 = vpop.f32.mrb[0].mxu0
    %716 = vmatprep.mubr.f32.mxu0 0.0
    %717 = vmatmul.mubr.f32.gmra.mrb[0].mxu0 %v332
    %v718 = vpop.f32.mrb[0].mxu0
    %v719 = vadd.f32 0.0, %v718
    %v720 = vpop.f32.mrb[0].mxu0
    %721 = vmatprep.mubr.f32.mxu0 0.0
    %722 = vmatmul.mubr.f32.gmra.mrb[0].mxu0 %v337
    %v723 = vpop.f32.mrb[0].mxu0
    %v724 = vadd.f32 0.0, %v723
    %v725 = vpop.f32.mrb[0].mxu0
    %726 = vmatprep.mubr.f32.mxu0 0.0
    %727 = vmatmul.mubr.f32.gmra.mrb[0].mxu0 %v342
    %v728 = vpop.f32.mrb[0].mxu0
    %v729 = vadd.f32 0.0, %v728
    %v730 = vpop.f32.mrb[0].mxu0
    %731 = vmatprep.mubr.f32.mxu0 0.0
    %732 = vmatmul.mubr.f32.gmra.mrb[0].mxu0 %v347
    %v733 = vpop.f32.mrb[0].mxu0
    %v734 = vadd.f32 0.0, %v733
    %v735 = vpop.f32.mrb[0].mxu0
    %736 = vmatprep.mubr.f32.mxu0 0.0
    %737 = vmatmul.mubr.f32.gmra.mrb[0].mxu0 %v352
    %v738 = vpop.f32.mrb[0].mxu0
    %v739 = vadd.f32 0.0, %v738
    %v740 = vpop.f32.mrb[0].mxu0
    %741 = vmatprep.mubr.f32.mxu0 0.0
    %742 = vmatmul.mubr.f32.gmra.mrb[0].mxu0 %v357
    %v743 = vpop.f32.mrb[0].mxu0
    %v744 = vadd.f32 0.0, %v743
    %v745 = vpop.f32.mrb[0].mxu0
    %746 = vmatprep.mubr.f32.mxu0 0.0
    %747 = vmatmul.mubr.f32.gmra.mrb[0].mxu0 %v362
    %v748 = vpop.f32.mrb[0].mxu0
    %v749 = vadd.f32 0.0, %v748
    %v750 = vpop.f32.mrb[0].mxu0
    %751 = vmatprep.mubr.f32.mxu0 0.0
    %752 = vmatmul.mubr.f32.gmra.mrb[0].mxu0 %v367
    %v753 = vpop.f32.mrb[0].mxu0
    %v754 = vadd.f32 0.0, %v753
    %v755 = vpop.f32.mrb[0].mxu0
    %756 = vmatprep.mubr.f32.mxu0 0.0
    %757 = vmatmul.mubr.f32.gmra.mrb[0].mxu0 %v454
    %v758 = vpop.f32.mrb[0].mxu0
    %v759 = vadd.f32 0.0, %v758
    %v760 = vpop.f32.mrb[0].mxu0
    %761 = vmatprep.mubr.f32.mxu0 0.0
    %762 = vmatmul.mubr.f32.gmra.mrb[0].mxu0 %v459
    %v763 = vpop.f32.mrb[0].mxu0
    %v764 = vadd.f32 0.0, %v763
    %v765 = vpop.f32.mrb[0].mxu0
    %766 = vmatprep.mubr.f32.mxu0 0.0
    %767 = vmatmul.mubr.f32.gmra.mrb[0].mxu0 %v464
    %v768 = vpop.f32.mrb[0].mxu0
    %v769 = vadd.f32 0.0, %v768
    %v770 = vpop.f32.mrb[0].mxu0
    %771 = vmatprep.mubr.f32.mxu0 0.0
    %772 = vmatmul.mubr.f32.gmra.mrb[0].mxu0 %v469
    %v773 = vpop.f32.mrb[0].mxu0
    %v774 = vadd.f32 0.0, %v773
    %v775 = vpop.f32.mrb[0].mxu0
    %776 = vmatprep.mubr.f32.mxu0 0.0
    %777 = vmatmul.mubr.f32.gmra.mrb[0].mxu0 %v474
    %v778 = vpop.f32.mrb[0].mxu0
    %v779 = vadd.f32 0.0, %v778
    %v780 = vpop.f32.mrb[0].mxu0
    %781 = vmatprep.mubr.f32.mxu0 0.0
    %782 = vmatmul.mubr.f32.gmra.mrb[0].mxu0 %v479
    %v783 = vpop.f32.mrb[0].mxu0
    %v784 = vadd.f32 0.0, %v783
    %v785 = vpop.f32.mrb[0].mxu0
    %786 = vmatprep.mubr.f32.mxu0 0.0
    %787 = vmatmul.mubr.f32.gmra.mrb[0].mxu0 %v484
    %v788 = vpop.f32.mrb[0].mxu0
    %v789 = vadd.f32 0.0, %v788
    %v790 = vpop.f32.mrb[0].mxu0
    %791 = vmatprep.mubr.f32.mxu0 0.0
    %792 = vmatmul.mubr.f32.gmra.mrb[0].mxu0 %v489
    %v793 = vpop.f32.mrb[0].mxu0
    %v794 = vadd.f32 0.0, %v793
    %v795 = vpop.f32.mrb[0].mxu0
    %796 = vmatprep.mubr.f32.mxu0 0.0
    %797 = vmatmul.mubr.f32.gmra.mrb[0].mxu0 %v494
    %v798 = vpop.f32.mrb[0].mxu0
    %v799 = vadd.f32 0.0, %v798
    %v800 = vpop.f32.mrb[0].mxu0
    %801 = vmatprep.mubr.f32.mxu0 0.0
    %802 = vmatmul.mubr.f32.gmra.mrb[0].mxu0 %v499
    %v803 = vpop.f32.mrb[0].mxu0
    %v804 = vadd.f32 0.0, %v803
    %v805 = vpop.f32.mrb[0].mxu0
    %806 = vmatprep.mubr.f32.mxu0 0.0
    %807 = vmatmul.mubr.f32.gmra.mrb[0].mxu0 %v504
    %v808 = vpop.f32.mrb[0].mxu0
    %v809 = vadd.f32 0.0, %v808
    %v810 = vpop.f32.mrb[0].mxu0
    %811 = vmatprep.mubr.f32.mxu0 0.0
    %812 = vmatmul.mubr.f32.gmra.mrb[0].mxu0 %v509
    %v813 = vpop.f32.mrb[0].mxu0
    %v814 = vadd.f32 0.0, %v813
    %v815 = vpop.f32.mrb[0].mxu0
    %816 = vmatprep.mubr.f32.mxu0 0.0
    %817 = vmatmul.mubr.f32.gmra.mrb[0].mxu0 %v514
    %v818 = vpop.f32.mrb[0].mxu0
    %v819 = vadd.f32 0.0, %v818
    %v820 = vpop.f32.mrb[0].mxu0
    %821 = vmatprep.mubr.f32.mxu0 0.0
    %822 = vmatmul.mubr.f32.gmra.mrb[0].mxu0 %v519
    %v823 = vpop.f32.mrb[0].mxu0
    %v824 = vadd.f32 0.0, %v823
    %v825 = vpop.f32.mrb[0].mxu0
    %826 = vmatprep.mubr.f32.mxu0 0.0
    %827 = vmatmul.mubr.f32.gmra.mrb[0].mxu0 %v524
    %v828 = vpop.f32.mrb[0].mxu0
    %v829 = vadd.f32 0.0, %v828
    %v830 = vpop.f32.mrb[0].mxu0
    %831 = vmatprep.mubr.f32.mxu0 0.0
    %832 = vmatmul.mubr.f32.gmra.mrb[0].mxu0 %v529
    %v833 = vpop.f32.mrb[0].mxu0
    %v834 = vadd.f32 0.0, %v833
    %v835 = vpop.f32.mrb[0].mxu0
    %836 = vdwg.mxu0
    %v837 = vmul.f32 %v599, 255.0
    %v838 = vmul.f32 %v604, 255.0
    %v839 = vmul.f32 %v609, 255.0
    %v840 = vmul.f32 %v614, 255.0
    %v841 = vmul.f32 %v619, 255.0
    %v842 = vmul.f32 %v624, 255.0
    %v843 = vmul.f32 %v629, 255.0
    %v844 = vmul.f32 %v634, 255.0
    %v845 = vmul.f32 %v639, 255.0
    %v846 = vmul.f32 %v644, 255.0
    %v847 = vmul.f32 %v649, 255.0
    %v848 = vmul.f32 %v654, 255.0
    %v849 = vmul.f32 %v659, 255.0
    %v850 = vmul.f32 %v664, 255.0
    %v851 = vmul.f32 %v669, 255.0
    %v852 = vmul.f32 %v674, 255.0
    %v853 = vmul.f32 %v679, 255.0
    %v854 = vmul.f32 %v684, 255.0
    %v855 = vmul.f32 %v689, 255.0
    %v856 = vmul.f32 %v694, 255.0
    %v857 = vmul.f32 %v699, 255.0
    %v858 = vmul.f32 %v704, 255.0
    %v859 = vmul.f32 %v709, 255.0
    %v860 = vmul.f32 %v714, 255.0
    %v861 = vmul.f32 %v719, 255.0
    %v862 = vmul.f32 %v724, 255.0
    %v863 = vmul.f32 %v729, 255.0
    %v864 = vmul.f32 %v734, 255.0
    %v865 = vmul.f32 %v739, 255.0
    %v866 = vmul.f32 %v744, 255.0
    %v867 = vmul.f32 %v749, 255.0
    %v868 = vmul.f32 %v754, 255.0
    %v869 = vmul.f32 %v759, 255.0
    %v870 = vmul.f32 %v764, 255.0
    %v871 = vmul.f32 %v769, 255.0
    %v872 = vmul.f32 %v774, 255.0
    %v873 = vmul.f32 %v779, 255.0
    %v874 = vmul.f32 %v784, 255.0
    %v875 = vmul.f32 %v789, 255.0
    %v876 = vmul.f32 %v794, 255.0
    %v877 = vmul.f32 %v799, 255.0
    %v878 = vmul.f32 %v804, 255.0
    %v879 = vmul.f32 %v809, 255.0
    %v880 = vmul.f32 %v814, 255.0
    %v881 = vmul.f32 %v819, 255.0
    %v882 = vmul.f32 %v824, 255.0
    %v883 = vmul.f32 %v829, 255.0
    %v884 = vmul.f32 %v834, 255.0
    %v885 = vadd.f32 %v837, 0.5
    %v886 = vadd.f32 %v838, 0.5
    %v887 = vadd.f32 %v839, 0.5
    %v888 = vadd.f32 %v840, 0.5
    %v889 = vadd.f32 %v841, 0.5
    %v890 = vadd.f32 %v842, 0.5
    %v891 = vadd.f32 %v843, 0.5
    %v892 = vadd.f32 %v844, 0.5
    %v893 = vadd.f32 %v845, 0.5
    %v894 = vadd.f32 %v846, 0.5
    %v895 = vadd.f32 %v847, 0.5
    %v896 = vadd.f32 %v848, 0.5
    %v897 = vadd.f32 %v849, 0.5
    %v898 = vadd.f32 %v850, 0.5
    %v899 = vadd.f32 %v851, 0.5
    %v900 = vadd.f32 %v852, 0.5
    %v901 = vadd.f32 %v853, 0.5
    %v902 = vadd.f32 %v854, 0.5
    %v903 = vadd.f32 %v855, 0.5
    %v904 = vadd.f32 %v856, 0.5
    %v905 = vadd.f32 %v857, 0.5
    %v906 = vadd.f32 %v858, 0.5
    %v907 = vadd.f32 %v859, 0.5
    %v908 = vadd.f32 %v860, 0.5
    %v909 = vadd.f32 %v861, 0.5
    %v910 = vadd.f32 %v862, 0.5
    %v911 = vadd.f32 %v863, 0.5
    %v912 = vadd.f32 %v864, 0.5
    %v913 = vadd.f32 %v865, 0.5
    %v914 = vadd.f32 %v866, 0.5
    %v915 = vadd.f32 %v867, 0.5
    %v916 = vadd.f32 %v868, 0.5
    %v917 = vadd.f32 %v869, 0.5
    %v918 = vadd.f32 %v870, 0.5
    %v919 = vadd.f32 %v871, 0.5
    %v920 = vadd.f32 %v872, 0.5
    %v921 = vadd.f32 %v873, 0.5
    %v922 = vadd.f32 %v874, 0.5
    %v923 = vadd.f32 %v875, 0.5
    %v924 = vadd.f32 %v876, 0.5
    %v925 = vadd.f32 %v877, 0.5
    %v926 = vadd.f32 %v878, 0.5
    %v927 = vadd.f32 %v879, 0.5
    %v928 = vadd.f32 %v880, 0.5
    %v929 = vadd.f32 %v881, 0.5
    %v930 = vadd.f32 %v882, 0.5
    %v931 = vadd.f32 %v883, 0.5
    %v932 = vadd.f32 %v884, 0.5
    %v933 = vmax.f32 %v885, 0.0
    %v934 = vmax.f32 %v886, 0.0
    %v935 = vmax.f32 %v887, 0.0
    %v936 = vmax.f32 %v888, 0.0
    %v937 = vmax.f32 %v889, 0.0
    %v938 = vmax.f32 %v890, 0.0
    %v939 = vmax.f32 %v891, 0.0
    %v940 = vmax.f32 %v892, 0.0
    %v941 = vmax.f32 %v893, 0.0
    %v942 = vmax.f32 %v894, 0.0
    %v943 = vmax.f32 %v895, 0.0
    %v944 = vmax.f32 %v896, 0.0
    %v945 = vmax.f32 %v897, 0.0
    %v946 = vmax.f32 %v898, 0.0
    %v947 = vmax.f32 %v899, 0.0
    %v948 = vmax.f32 %v900, 0.0
    %v949 = vmax.f32 %v901, 0.0
    %v950 = vmax.f32 %v902, 0.0
    %v951 = vmax.f32 %v903, 0.0
    %v952 = vmax.f32 %v904, 0.0
    %v953 = vmax.f32 %v905, 0.0
    %v954 = vmax.f32 %v906, 0.0
    %v955 = vmax.f32 %v907, 0.0
    %v956 = vmax.f32 %v908, 0.0
    %v957 = vmax.f32 %v909, 0.0
    %v958 = vmax.f32 %v910, 0.0
    %v959 = vmax.f32 %v911, 0.0
    %v960 = vmax.f32 %v912, 0.0
    %v961 = vmax.f32 %v913, 0.0
    %v962 = vmax.f32 %v914, 0.0
    %v963 = vmax.f32 %v915, 0.0
    %v964 = vmax.f32 %v916, 0.0
    %v965 = vmax.f32 %v917, 0.0
    %v966 = vmax.f32 %v918, 0.0
    %v967 = vmax.f32 %v919, 0.0
    %v968 = vmax.f32 %v920, 0.0
    %v969 = vmax.f32 %v921, 0.0
    %v970 = vmax.f32 %v922, 0.0
    %v971 = vmax.f32 %v923, 0.0
    %v972 = vmax.f32 %v924, 0.0
    %v973 = vmax.f32 %v925, 0.0
    %v974 = vmax.f32 %v926, 0.0
    %v975 = vmax.f32 %v927, 0.0
    %v976 = vmax.f32 %v928, 0.0
    %v977 = vmax.f32 %v929, 0.0
    %v978 = vmax.f32 %v930, 0.0
    %v979 = vmax.f32 %v931, 0.0
    %v980 = vmax.f32 %v932, 0.0
    %v981 = vmin.f32 %v933, 255.0
    %v982 = vmin.f32 %v934, 255.0
    %v983 = vmin.f32 %v935, 255.0
    %v984 = vmin.f32 %v936, 255.0
    %v985 = vmin.f32 %v937, 255.0
    %v986 = vmin.f32 %v938, 255.0
    %v987 = vmin.f32 %v939, 255.0
    %v988 = vmin.f32 %v940, 255.0
    %v989 = vmin.f32 %v941, 255.0
    %v990 = vmin.f32 %v942, 255.0
    %v991 = vmin.f32 %v943, 255.0
    %v992 = vmin.f32 %v944, 255.0
    %v993 = vmin.f32 %v945, 255.0
    %v994 = vmin.f32 %v946, 255.0
    %v995 = vmin.f32 %v947, 255.0
    %v996 = vmin.f32 %v948, 255.0
    %v997 = vmin.f32 %v949, 255.0
    %v998 = vmin.f32 %v950, 255.0
    %v999 = vmin.f32 %v951, 255.0
    %v1000 = vmin.f32 %v952, 255.0
    %v1001 = vmin.f32 %v953, 255.0
    %v1002 = vmin.f32 %v954, 255.0
    %v1003 = vmin.f32 %v955, 255.0
    %v1004 = vmin.f32 %v956, 255.0
    %v1005 = vmin.f32 %v957, 255.0
    %v1006 = vmin.f32 %v958, 255.0
    %v1007 = vmin.f32 %v959, 255.0
    %v1008 = vmin.f32 %v960, 255.0
    %v1009 = vmin.f32 %v961, 255.0
    %v1010 = vmin.f32 %v962, 255.0
    %v1011 = vmin.f32 %v963, 255.0
    %v1012 = vmin.f32 %v964, 255.0
    %v1013 = vmin.f32 %v965, 255.0
    %v1014 = vmin.f32 %v966, 255.0
    %v1015 = vmin.f32 %v967, 255.0
    %v1016 = vmin.f32 %v968, 255.0
    %v1017 = vmin.f32 %v969, 255.0
    %v1018 = vmin.f32 %v970, 255.0
    %v1019 = vmin.f32 %v971, 255.0
    %v1020 = vmin.f32 %v972, 255.0
    %v1021 = vmin.f32 %v973, 255.0
    %v1022 = vmin.f32 %v974, 255.0
    %v1023 = vmin.f32 %v975, 255.0
    %v1024 = vmin.f32 %v976, 255.0
    %v1025 = vmin.f32 %v977, 255.0
    %v1026 = vmin.f32 %v978, 255.0
    %v1027 = vmin.f32 %v979, 255.0
    %v1028 = vmin.f32 %v980, 255.0
    %v1029 = vcvt.f32.s32.to.zero.pseudo %v981
    %v1030 = vcvt.f32.s32.to.zero.pseudo %v982
    %v1031 = vcvt.f32.s32.to.zero.pseudo %v983
    %v1032 = vcvt.f32.s32.to.zero.pseudo %v984
    %v1033 = vcvt.f32.s32.to.zero.pseudo %v985
    %v1034 = vcvt.f32.s32.to.zero.pseudo %v986
    %v1035 = vcvt.f32.s32.to.zero.pseudo %v987
    %v1036 = vcvt.f32.s32.to.zero.pseudo %v988
    %v1037 = vcvt.f32.s32.to.zero.pseudo %v989
    %v1038 = vcvt.f32.s32.to.zero.pseudo %v990
    %v1039 = vcvt.f32.s32.to.zero.pseudo %v991
    %v1040 = vcvt.f32.s32.to.zero.pseudo %v992
    %v1041 = vcvt.f32.s32.to.zero.pseudo %v993
    %v1042 = vcvt.f32.s32.to.zero.pseudo %v994
    %v1043 = vcvt.f32.s32.to.zero.pseudo %v995
    %v1044 = vcvt.f32.s32.to.zero.pseudo %v996
    %v1045 = vcvt.f32.s32.to.zero.pseudo %v997
    %v1046 = vcvt.f32.s32.to.zero.pseudo %v998
    %v1047 = vcvt.f32.s32.to.zero.pseudo %v999
    %v1048 = vcvt.f32.s32.to.zero.pseudo %v1000
    %v1049 = vcvt.f32.s32.to.zero.pseudo %v1001
    %v1050 = vcvt.f32.s32.to.zero.pseudo %v1002
    %v1051 = vcvt.f32.s32.to.zero.pseudo %v1003
    %v1052 = vcvt.f32.s32.to.zero.pseudo %v1004
    %v1053 = vcvt.f32.s32.to.zero.pseudo %v1005
    %v1054 = vcvt.f32.s32.to.zero.pseudo %v1006
    %v1055 = vcvt.f32.s32.to.zero.pseudo %v1007
    %v1056 = vcvt.f32.s32.to.zero.pseudo %v1008
    %v1057 = vcvt.f32.s32.to.zero.pseudo %v1009
    %v1058 = vcvt.f32.s32.to.zero.pseudo %v1010
    %v1059 = vcvt.f32.s32.to.zero.pseudo %v1011
    %v1060 = vcvt.f32.s32.to.zero.pseudo %v1012
    %v1061 = vcvt.f32.s32.to.zero.pseudo %v1013
    %v1062 = vcvt.f32.s32.to.zero.pseudo %v1014
    %v1063 = vcvt.f32.s32.to.zero.pseudo %v1015
    %v1064 = vcvt.f32.s32.to.zero.pseudo %v1016
    %v1065 = vcvt.f32.s32.to.zero.pseudo %v1017
    %v1066 = vcvt.f32.s32.to.zero.pseudo %v1018
    %v1067 = vcvt.f32.s32.to.zero.pseudo %v1019
    %v1068 = vcvt.f32.s32.to.zero.pseudo %v1020
    %v1069 = vcvt.f32.s32.to.zero.pseudo %v1021
    %v1070 = vcvt.f32.s32.to.zero.pseudo %v1022
    %v1071 = vcvt.f32.s32.to.zero.pseudo %v1023
    %v1072 = vcvt.f32.s32.to.zero.pseudo %v1024
    %v1073 = vcvt.f32.s32.to.zero.pseudo %v1025
    %v1074 = vcvt.f32.s32.to.zero.pseudo %v1026
    %v1075 = vcvt.f32.s32.to.zero.pseudo %v1027
    %v1076 = vcvt.f32.s32.to.zero.pseudo %v1028
    %v1077 = vpack.c.b16 %v1030, %v1029
    %v1078 = vpack.c.b16 %v1032, %v1031
    %v1079 = vpack.c.b8 %v1078, %v1077
    %v1080 = vpack.c.b16 %v1034, %v1033
    %v1081 = vpack.c.b16 %v1036, %v1035
    %v1082 = vpack.c.b8 %v1081, %v1080
    %v1083 = vpack.c.b16 %v1038, %v1037
    %v1084 = vpack.c.b16 %v1040, %v1039
    %v1085 = vpack.c.b8 %v1084, %v1083
    %v1086 = vpack.c.b16 %v1042, %v1041
    %v1087 = vpack.c.b16 %v1044, %v1043
    %v1088 = vpack.c.b8 %v1087, %v1086
    %v1089 = vpack.c.b16 %v1046, %v1045
    %v1090 = vpack.c.b16 %v1048, %v1047
    %v1091 = vpack.c.b8 %v1090, %v1089
    %v1092 = vpack.c.b16 %v1050, %v1049
    %v1093 = vpack.c.b16 %v1052, %v1051
    %v1094 = vpack.c.b8 %v1093, %v1092
    %v1095 = vpack.c.b16 %v1054, %v1053
    %v1096 = vpack.c.b16 %v1056, %v1055
    %v1097 = vpack.c.b8 %v1096, %v1095
    %v1098 = vpack.c.b16 %v1058, %v1057
    %v1099 = vpack.c.b16 %v1060, %v1059
    %v1100 = vpack.c.b8 %v1099, %v1098
    %v1101 = vpack.c.b16 %v1062, %v1061
    %v1102 = vpack.c.b16 %v1064, %v1063
    %v1103 = vpack.c.b8 %v1102, %v1101
    %v1104 = vpack.c.b16 %v1066, %v1065
    %v1105 = vpack.c.b16 %v1068, %v1067
    %v1106 = vpack.c.b8 %v1105, %v1104
    %v1107 = vpack.c.b16 %v1070, %v1069
    %v1108 = vpack.c.b16 %v1072, %v1071
    %v1109 = vpack.c.b8 %v1108, %v1107
    %v1110 = vpack.c.b16 %v1074, %v1073
    %v1111 = vpack.c.b16 %v1076, %v1075
    %v1112 = vpack.c.b8 %v1111, %v1110
    %1113 = vst [vmem:[#allocation2] sm:$0xff] %v1079
    %1114 = vst [vmem:[#allocation2 + $0x8] sm:$0xff] %v1082
    %1115 = vst [vmem:[#allocation2 + $0x10] sm:$0xff] %v1085
    %1116 = vst [vmem:[#allocation2 + $0x18] sm:$0xff] %v1088
    %1117 = vst [vmem:[#allocation2 + $0x20] sm:$0xff] %v1091
    %1118 = vst [vmem:[#allocation2 + $0x28] sm:$0xff] %v1094
    %1119 = vst [vmem:[#allocation2 + $0x30] sm:$0xff] %v1097
    %1120 = vst [vmem:[#allocation2 + $0x38] sm:$0xff] %v1100
    %1121 = vst [vmem:[#allocation2 + $0x40] sm:$0xff] %v1103
    %1122 = vst [vmem:[#allocation2 + $0x48] sm:$0xff] %v1106
    %1123 = vst [vmem:[#allocation2 + $0x50] sm:$0xff] %v1109
    %1124 = vst [vmem:[#allocation2 + $0x58] sm:$0xff] %v1112
    // Predicated region
    $region14: #{data_augmentation.1} parent=1 // pred_check
      _
    $region15: #{data_augmentation.1} parent=1 // pred_check_branch
      %1126 = sbr.rel (0) target = $region17
    $region16: #{data_augmentation.1} parent=1 // pred_region
      %s1128 = ssub.s32 1536, 1536
      %1129 = vsyncadd [#allocation3], %s1128
      %s1130 = sshll.u32 [#allocation2], 4
      %s1131 = int_to_ptr.vmem [resolvable:$true] %s1130
      %1136 = dma.vmem_to_hbm [thread:$0]  %s1131, 1536, %s3, [#allocation3], 128, 128, 8
    $region17: #{data_augmentation.1} parent=1 // pred_fallthru
      _
    // Predicated region
    $region18: #{data_augmentation.1} parent=1 // pred_check
      _
    $region19: #{data_augmentation.1} parent=1 // pred_check_branch
      %1138 = sbr.rel (0) target = $region21
    $region20: #{data_augmentation.1} parent=1 // pred_region
      %1139 = dma.done [#allocation3], 1536
    $region21: #{data_augmentation.1} parent=1 // pred_fallthru
      _
    %1140 = vsyncpa [#allocation3], 1

</llo_original>
